<compile_context>
chip_gen: v7x
topology: tpu7x:2x2x1
jax: 0.10.0
libtpu: 0.0.40
codegen_flags: <defaults>
</compile_context>

<pallas_src>
import functools

import jax
import jax.numpy as jnp
from jax.experimental import pallas as pl
from jax.experimental.pallas import tpu as pltpu


def _static_pow(base, exponent: float):
    """base ** exponent with small integer exponents strength-reduced to
    multiply chains (VALU) instead of exp/log on the EUP."""
    e = float(exponent)
    if e == int(e) and 0 <= int(e) <= 8:
        n = int(e)
        if n == 0:
            return jnp.ones_like(base)
        r = base
        for _ in range(n - 1):
            r = r * base
        return r
    return jnp.power(base, e)


def _poly1_focal_kernel(labels_ref, logits_ref, out_ref, *,
                        epsilon: float, alpha: float, gamma: float):
    x = logits_ref[...].astype(jnp.float32)            # (1, C, ts)
    lab = labels_ref[...]                               # (1, 1, ts) int32

    # one-hot along the class (sublane) axis: compare sublane iota vs labels
    cls = jax.lax.broadcasted_iota(jnp.int32, x.shape, 1)
    y = (cls == lab).astype(jnp.float32)                # (1, C, ts)

    # share one transcendental: e = exp(-|x|)
    e = jnp.exp(-jnp.abs(x))
    inv = 1.0 / (1.0 + e)
    # exact sigmoid (approx EUP reciprocal would cost ~1e-4 rel error)
    p = jnp.where(x >= 0.0, inv, e * inv)

    # numerically stable binary_cross_entropy_with_logits (weight/pos_weight=None)
    ce = jnp.maximum(x, 0.0) - x * y + jnp.log1p(e)

    pt = y * p + (1.0 - y) * (1.0 - p)
    omp = 1.0 - pt

    omp_g = _static_pow(omp, gamma)                     # (1-pt)**gamma
    fl = ce * omp_g
    if alpha >= 0.0:
        fl = (alpha * y + (1.0 - alpha) * (1.0 - y)) * fl

    # (1-pt)**(gamma+1) == omp_g * omp  (omp >= 0)
    out_ref[...] = (fl + epsilon * (omp_g * omp)).astype(out_ref.dtype)


def _round_up(x: int, m: int) -> int:
    return ((x + m - 1) // m) * m


def poly1_focal_loss(logits, labels, *, num_classes: int, epsilon: float = 1.0,
                     alpha: float = 0.25, gamma: float = 2.0,
                     reduction: str = "none", weight=None, pos_weight=None,
                     label_is_onehot: bool = False):
    """logits: [N, C] or [N, C, ...spatial]; labels: [N] or [N, ...spatial] class ids."""
    if weight is not None or pos_weight is not None:
        # TODO(synk): per-class weight / pos_weight rescaling not implemented (module default is None).
        raise NotImplementedError("weight/pos_weight are not supported")
    if label_is_onehot:
        # TODO(synk): one-hot-encoded label inputs not implemented (module default is False).
        raise NotImplementedError("label_is_onehot=True is not supported")

    orig_shape = logits.shape
    if logits.ndim == 2:
        # [N, C] -> [1, C, N]: class on sublanes, batch on lanes. Small transpose,
        # only for the no-spatial case (no spatial blow-up).
        x3 = jnp.transpose(logits, (1, 0))[None]                   # [1, C, N]
        lab3 = labels.reshape(1, 1, -1).astype(jnp.int32)          # [1, 1, N]
    else:
        # N, C, spatial... -> [N, C, S]: free (contiguous) reshape, no transpose.
        B0, C0 = orig_shape[0], orig_shape[1]
        S0 = 1
        for d in orig_shape[2:]:
            S0 *= d
        x3 = logits.reshape(B0, C0, S0)
        lab3 = labels.reshape(B0, 1, S0).astype(jnp.int32)

    B, C, S = x3.shape
    assert C == num_classes, f"class dim {C} != num_classes {num_classes}"

    # spatial (lane) tile: multiple of 128, logits block ~2 MiB f32.
    target_block_bytes = 2 * 1024 * 1024
    max_lanes = max(128, (target_block_bytes // (4 * C)) // 128 * 128)
    ts = min(_round_up(S, 128), max_lanes)
    n_s = pl.cdiv(S, ts)
    # keep >= 2 grid steps when possible so v7x's two TensorCores both get work
    if B * n_s < 2 and S > 128:
        ts = max(128, _round_up(pl.cdiv(S, 2), 128))
        n_s = pl.cdiv(S, ts)

    kernel = functools.partial(_poly1_focal_kernel,
                               epsilon=float(epsilon),
                               alpha=float(alpha),
                               gamma=float(gamma))

    out3 = pl.pallas_call(
        kernel,
        out_shape=jax.ShapeDtypeStruct((B, C, S), logits.dtype),
        grid_spec=pltpu.PrefetchScalarGridSpec(
            num_scalar_prefetch=0,
            grid=(B, n_s),
            in_specs=[
                pl.BlockSpec((1, 1, ts), lambda b, s: (b, 0, s)),   # labels [B,1,S]
                pl.BlockSpec((1, C, ts), lambda b, s: (b, 0, s)),   # logits [B,C,S]
            ],
            out_specs=pl.BlockSpec((1, C, ts), lambda b, s: (b, 0, s)),
        ),
        compiler_params=pltpu.CompilerParams(
            dimension_semantics=("parallel", "parallel")),
    )(lab3, x3)

    if logits.ndim == 2:
        out = jnp.transpose(out3[0], (1, 0))            # [1,C,N] -> [N,C]
    else:
        out = out3.reshape(orig_shape)                  # free reshape back to NCHW...

    if reduction == "mean":
        out = out.mean()
    elif reduction == "sum":
        out = out.sum()
    return out


def _reference(logits, labels, *, num_classes, epsilon, alpha, gamma):
    p = jax.nn.sigmoid(logits)
    y = jax.nn.one_hot(labels, num_classes, axis=1, dtype=logits.dtype)
    ce = jnp.maximum(logits, 0.0) - logits * y + jnp.log1p(jnp.exp(-jnp.abs(logits)))
    pt = y * p + (1 - y) * (1 - p)
    fl = ce * (1 - pt) ** gamma
    if alpha >= 0:
        fl = (alpha * y + (1 - alpha) * (1 - y)) * fl
    return fl + epsilon * (1 - pt) ** (gamma + 1)


if __name__ == "__main__":
    num_classes = 4
    N, C, H, W = 2, num_classes, 16, 16

    key = jax.random.PRNGKey(0)
    k1, k2, k3, k4 = jax.random.split(key, 4)

    # 4-D NCHW case (main path, zero transposes)
    logits = jax.random.normal(k1, (N, C, H, W), dtype=jnp.float32)
    labels = jax.random.randint(k2, (N, H, W), 0, num_classes, dtype=jnp.int32)

    out = poly1_focal_loss(logits, labels, num_classes=num_classes,
                           epsilon=1.0, alpha=0.25, gamma=2.0, reduction="none")
    out = jax.block_until_ready(out)
    ref = _reference(logits, labels, num_classes=num_classes,
                     epsilon=1.0, alpha=0.25, gamma=2.0)
    assert out.shape == (N, C, H, W)
    assert jnp.allclose(out, ref, atol=1e-5, rtol=1e-5), "4D mismatch vs JAX reference"

    # 2-D [N, C] case
    logits2 = jax.random.normal(k3, (8, num_classes), dtype=jnp.float32)
    labels2 = jax.random.randint(k4, (8,), 0, num_classes, dtype=jnp.int32)
    out2 = poly1_focal_loss(logits2, labels2, num_classes=num_classes,
                            epsilon=1.0, alpha=0.25, gamma=2.0, reduction="none")
    out2 = jax.block_until_ready(out2)
    ref2 = _reference(logits2, labels2, num_classes=num_classes,
                      epsilon=1.0, alpha=0.25, gamma=2.0)
    assert out2.shape == (8, num_classes)
    assert jnp.allclose(out2, ref2, atol=1e-5, rtol=1e-5), "2D mismatch vs JAX reference"

    print("KERNEL_OK")
</pallas_src>

<mosaic_0001>
module attributes {stable_mosaic.version = 11 : i64} {
  func.func @_poly1_focal_kernel(%arg0: i32, %arg1: i32, %arg2: memref<1x1x256xi32, #tpu.memory_space<vmem>>, %arg3: memref<1x4x256xf32, #tpu.memory_space<vmem>>, %arg4: memref<1x4x256xf32, #tpu.memory_space<vmem>>) attributes {dimension_semantics = [#tpu.dimension_semantics<parallel>, #tpu.dimension_semantics<parallel>], iteration_bounds = array<i64: 2, 1>, scalar_prefetch = 0 : i64, scratch_operands = 0 : i64, tpu.core_type = #tpu.core_type<tc>, window_params = [{transform_indices = @transform_0, window_bounds = array<i64: 1, 1, 256>}, {transform_indices = @transform_1, window_bounds = array<i64: 1, 4, 256>}, {transform_indices = @transform_2, window_bounds = array<i64: 1, 4, 256>}]} {
    %c0 = arith.constant 0 : index
    %c0_0 = arith.constant 0 : index
    %c0_1 = arith.constant 0 : index
    %0 = vector.load %arg3[%c0, %c0_0, %c0_1] : memref<1x4x256xf32, #tpu.memory_space<vmem>>, vector<1x4x256xf32>
    %c0_2 = arith.constant 0 : index
    %c0_3 = arith.constant 0 : index
    %c0_4 = arith.constant 0 : index
    %1 = vector.load %arg2[%c0_2, %c0_3, %c0_4] : memref<1x1x256xi32, #tpu.memory_space<vmem>>, vector<1x1x256xi32>
    %2 = tpu.iota {dimensions = array<i32: 1>} : vector<1x4x256xi32>
    %3 = vector.broadcast %1 : vector<1x1x256xi32> to vector<1x4x256xi32>
    %4 = arith.cmpi eq, %2, %3 : vector<1x4x256xi32>
    %5 = arith.extui %4 : vector<1x4x256xi1> to vector<1x4x256xi32>
    %6 = arith.sitofp %5 : vector<1x4x256xi32> to vector<1x4x256xf32>
    %7 = math.absf %0 : vector<1x4x256xf32>
    %cst = arith.constant 0.000000e+00 : f32
    %8 = vector.broadcast %cst : f32 to vector<1x4x256xf32>
    %9 = arith.subf %8, %7 : vector<1x4x256xf32>
    %10 = math.exp %9 : vector<1x4x256xf32>
    %cst_5 = arith.constant 1.000000e+00 : f32
    %11 = vector.broadcast %cst_5 : f32 to vector<1x4x256xf32>
    %12 = arith.addf %11, %10 : vector<1x4x256xf32>
    %cst_6 = arith.constant 1.000000e+00 : f32
    %13 = vector.broadcast %cst_6 : f32 to vector<1x4x256xf32>
    %14 = arith.divf %13, %12 : vector<1x4x256xf32>
    %cst_7 = arith.constant 0.000000e+00 : f32
    %15 = vector.broadcast %cst_7 : f32 to vector<1x4x256xf32>
    %16 = arith.cmpf oge, %0, %15 : vector<1x4x256xf32>
    %17 = arith.mulf %10, %14 : vector<1x4x256xf32>
    %18 = arith.select %16, %14, %17 : vector<1x4x256xi1>, vector<1x4x256xf32>
    %cst_8 = arith.constant 0.000000e+00 : f32
    %19 = vector.broadcast %cst_8 : f32 to vector<1x4x256xf32>
    %20 = arith.maximumf %0, %19 : vector<1x4x256xf32>
    %21 = arith.mulf %0, %6 : vector<1x4x256xf32>
    %22 = arith.subf %20, %21 : vector<1x4x256xf32>
    %23 = math.log1p %10 : vector<1x4x256xf32>
    %24 = arith.addf %22, %23 : vector<1x4x256xf32>
    %25 = arith.mulf %6, %18 : vector<1x4x256xf32>
    %cst_9 = arith.constant 1.000000e+00 : f32
    %26 = vector.broadcast %cst_9 : f32 to vector<1x4x256xf32>
    %27 = arith.subf %26, %6 : vector<1x4x256xf32>
    %cst_10 = arith.constant 1.000000e+00 : f32
    %28 = vector.broadcast %cst_10 : f32 to vector<1x4x256xf32>
    %29 = arith.subf %28, %18 : vector<1x4x256xf32>
    %30 = arith.mulf %27, %29 : vector<1x4x256xf32>
    %31 = arith.addf %25, %30 : vector<1x4x256xf32>
    %cst_11 = arith.constant 1.000000e+00 : f32
    %32 = vector.broadcast %cst_11 : f32 to vector<1x4x256xf32>
    %33 = arith.subf %32, %31 : vector<1x4x256xf32>
    %34 = arith.mulf %33, %33 : vector<1x4x256xf32>
    %35 = arith.mulf %24, %34 : vector<1x4x256xf32>
    %cst_12 = arith.constant 2.500000e-01 : f32
    %36 = vector.broadcast %cst_12 : f32 to vector<1x4x256xf32>
    %37 = arith.mulf %36, %6 : vector<1x4x256xf32>
    %cst_13 = arith.constant 1.000000e+00 : f32
    %38 = vector.broadcast %cst_13 : f32 to vector<1x4x256xf32>
    %39 = arith.subf %38, %6 : vector<1x4x256xf32>
    %cst_14 = arith.constant 7.500000e-01 : f32
    %40 = vector.broadcast %cst_14 : f32 to vector<1x4x256xf32>
    %41 = arith.mulf %40, %39 : vector<1x4x256xf32>
    %42 = arith.addf %37, %41 : vector<1x4x256xf32>
    %43 = arith.mulf %42, %35 : vector<1x4x256xf32>
    %44 = arith.mulf %34, %33 : vector<1x4x256xf32>
    %cst_15 = arith.constant 1.000000e+00 : f32
    %45 = vector.broadcast %cst_15 : f32 to vector<1x4x256xf32>
    %46 = arith.mulf %45, %44 : vector<1x4x256xf32>
    %47 = arith.addf %43, %46 : vector<1x4x256xf32>
    %c0_16 = arith.constant 0 : index
    %c0_17 = arith.constant 0 : index
    %c0_18 = arith.constant 0 : index
    %48 = vector.load %arg4[%c0_16, %c0_17, %c0_18] : memref<1x4x256xf32, #tpu.memory_space<vmem>>, vector<1x4x256xf32>
    tpu.vector_store %arg4[%c0_16, %c0_17, %c0_18], %47 {strides = array<i32>} : memref<1x4x256xf32, #tpu.memory_space<vmem>>, vector<1x4x256xf32>,
    return
  }
  func.func @transform_0(%arg0: i32, %arg1: i32) -> (i32, i32, i32) {
    %c0_i32 = arith.constant 0 : i32
    %c0_i32_0 = arith.constant 0 : i32
    return %arg0, %c0_i32, %arg1 : i32, i32, i32
  }
  func.func @transform_1(%arg0: i32, %arg1: i32) -> (i32, i32, i32) {
    %c0_i32 = arith.constant 0 : i32
    %c0_i32_0 = arith.constant 0 : i32
    return %arg0, %c0_i32, %arg1 : i32, i32, i32
  }
  func.func @transform_2(%arg0: i32, %arg1: i32) -> (i32, i32, i32) {
    %c0_i32 = arith.constant 0 : i32
    %c0_i32_0 = arith.constant 0 : i32
    return %arg0, %c0_i32, %arg1 : i32, i32, i32
  }
}

</mosaic_0001>

<llo_original>
// kernel: tpu_custom_call.1
$region0: #{tpu_custom_call.1}
  #allocation0 [shape = 'u32[]', space=smem, size = 0x4, offset = 0x4, fixed_abs, tag = 'smem constant byte address 0x4 - core index']
  #allocation1 [shape = 'u32[144,128]{1,0:T(1,128)}', space=vmem, size = 0x12000, scoped, tag = 'internal scratch']
  %s0 = inlined_call_operand.hbm [shape: s32[2,1,256], index: 0, kind: input, shape index: {}]
  %s1 = inlined_call_operand.hbm [shape: f32[2,4,256], index: 1, kind: input, shape index: {}]
  %s2 = inlined_call_operand.hbm [shape: f32[2,4,256], index: 2, kind: output, shape index: {}]
  %s3 = sld [smem:[#allocation0]]
  $region49: #{tpu_custom_call.1} parent=0
    _
  %s5 = ssub.s32 1, %s3
  %s6 = scalar_select 0, %s5, %s3
  $region1: #{tpu_custom_call.1} parent=0
    #allocation2 [shape = 'u8[2048]{0}', space=vmem, size = 0x800, scoped, tag = 'input window, operand 0']
    #allocation3 [shape = 's32[2]{0}', space=sflag, size = 0x8, scoped, tag = 'scoped memory for tpu_custom_call.1']
    #allocation4 [shape = 's32[2]{0}', space=sflag, size = 0x8, scoped, tag = 'scoped memory for tpu_custom_call.1']
    #allocation5 [shape = 'u8[8192]{0}', space=vmem, size = 0x2000, scoped, tag = 'input window, operand 1']
    #allocation6 [shape = 's32[2]{0}', space=sflag, size = 0x8, scoped, tag = 'scoped memory for tpu_custom_call.1']
    #allocation7 [shape = 'u8[8192]{0}', space=vmem, size = 0x2000, scoped, tag = 'output window, operand 0']
    %7 = vsyncpa [#allocation3], 0
    %s8 = scalar_lea.sflag [#allocation3], 1
    %9 = vsyncpa %s8, 0
    %10 = vsyncpa [#allocation6], 0
    %s11 = scalar_lea.sflag [#allocation6], 1
    %12 = vsyncpa %s11, 0
    %13 = vsyncpa [#allocation4], 0
    %s14 = scalar_lea.sflag [#allocation4], 1
    %15 = vsyncpa %s14, 0
    loop: start=0, step=1, limit=4
    $region2: #{tpu_custom_call.1} parent=1 // loop_pre_header
      _
    $region3: #{tpu_custom_call.1} parent=1 // loop_header
      %s17 = sphi 0, %s21
      %p18 = scmp.ge.s32.totalorder %s17, 4
      %s24 = sphi 0, %s36
      %s25 = sphi 0, %s32
      %s26 = sphi 0, %s24
      %s27 = sphi 0, %s25
      %s28 = sphi 0, %s26
      %s29 = sphi 0, %s27
      %s41 = sphi 0, %s43
      %s44 = sphi 0, %s41
      %s45 = sphi 0, %s44
      %s61 = sphi 0, %s45
      %s69 = sphi 0, %s71
      %s72 = sphi 0, %s69
      %s73 = sphi 0, %s72
      %s89 = sphi 0, %s73
      %s97 = sphi 0, %s99
      %s100 = sphi 0, %s97
      %s101 = sphi 0, %s100
      %s117 = sphi 0, %s101
    $region4: #{tpu_custom_call.1} parent=1 // loop_header_branch
      %20 = sbr.rel (%p18) target = $region8
    $region5: #{tpu_custom_call.1} parent=1 // loop_body
      %s22 = ssub.s32 %s17, 1
      %s23 = ssub.s32 %s17, 2
      %s30 = sadd.s32 1, %s25
      %p31 = scmp.ge.s32.totalorder %s30, 1
      %s32 = scalar_select %p31, 0, %s30
      %s33 = sadd.s32 1, %s24
      %s34 = scalar_select %p31, %s33, %s24
      %p35 = scmp.ge.s32.totalorder %s34, 2
      %s36 = scalar_select %p35, 0, %s34
      %s37 = ssub.s32 %s24, %s36
      %s38 = ssub.s32 %s25, %s32
      %s39 = sor.u32 %s37, %s38
      %p40 = scmp.eq.s32.totalorder %s39, 0
      %s42 = sadd.s32 %s41, 1
      %s43 = scalar_select %p40, %s41, %s42
      %p46 = pneg %p40
      %p47 = scmp.eq.s32.totalorder %s17, 1
      %p48 = por %p46, %p47
      %p49 = scmp.ne.s32.totalorder %s41, %s44
      %p50 = scmp.eq.s32.totalorder %s17, 0
      %p51 = por %p49, %p50
      %p52 = scmp.ne.s32.totalorder %s41, %s44
      %p53 = scmp.eq.s32.totalorder %s22, 1
      %p54 = por %p52, %p53
      %p55 = scmp.ne.s32.totalorder %s44, %s45
      %p56 = scmp.eq.s32.totalorder %s22, 0
      %p57 = por %p55, %p56
      %p58 = scmp.ne.s32.totalorder %s44, %s45
      %p59 = scmp.eq.s32.totalorder %s23, 1
      %p60 = por %p58, %p59
      %p62 = scmp.ne.s32.totalorder %s45, %s61
      %p63 = scmp.eq.s32.totalorder %s23, 0
      %p64 = por %p62, %p63
      %s65 = ssub.s32 %s24, %s36
      %s66 = ssub.s32 %s25, %s32
      %s67 = sor.u32 %s65, %s66
      %p68 = scmp.eq.s32.totalorder %s67, 0
      %s70 = sadd.s32 %s69, 1
      %s71 = scalar_select %p68, %s69, %s70
      %p74 = pneg %p68
      %p75 = scmp.eq.s32.totalorder %s17, 1
      %p76 = por %p74, %p75
      %p77 = scmp.ne.s32.totalorder %s69, %s72
      %p78 = scmp.eq.s32.totalorder %s17, 0
      %p79 = por %p77, %p78
      %p80 = scmp.ne.s32.totalorder %s69, %s72
      %p81 = scmp.eq.s32.totalorder %s22, 1
      %p82 = por %p80, %p81
      %p83 = scmp.ne.s32.totalorder %s72, %s73
      %p84 = scmp.eq.s32.totalorder %s22, 0
      %p85 = por %p83, %p84
      %p86 = scmp.ne.s32.totalorder %s72, %s73
      %p87 = scmp.eq.s32.totalorder %s23, 1
      %p88 = por %p86, %p87
      %p90 = scmp.ne.s32.totalorder %s73, %s89
      %p91 = scmp.eq.s32.totalorder %s23, 0
      %p92 = por %p90, %p91
      %s93 = ssub.s32 %s24, %s36
      %s94 = ssub.s32 %s25, %s32
      %s95 = sor.u32 %s93, %s94
      %p96 = scmp.eq.s32.totalorder %s95, 0
      %s98 = sadd.s32 %s97, 1
      %s99 = scalar_select %p96, %s97, %s98
      %p102 = pneg %p96
      %p103 = scmp.eq.s32.totalorder %s17, 1
      %p104 = por %p102, %p103
      %p105 = scmp.ne.s32.totalorder %s97, %s100
      %p106 = scmp.eq.s32.totalorder %s17, 0
      %p107 = por %p105, %p106
      %p108 = scmp.ne.s32.totalorder %s97, %s100
      %p109 = scmp.eq.s32.totalorder %s22, 1
      %p110 = por %p108, %p109
      %p111 = scmp.ne.s32.totalorder %s100, %s101
      %p112 = scmp.eq.s32.totalorder %s22, 0
      %p113 = por %p111, %p112
      %p114 = scmp.ne.s32.totalorder %s100, %s101
      %p115 = scmp.eq.s32.totalorder %s23, 1
      %p116 = por %p114, %p115
      %p118 = scmp.ne.s32.totalorder %s101, %s117
      %p119 = scmp.eq.s32.totalorder %s23, 0
      %p120 = por %p118, %p119
      %p121 = scmp.le.s32.totalorder 1, %s17
      %p122 = scmp.lt.s32.totalorder %s17, 3
      %p123 = pnand %p121, %p122
      %p124 = pneg %p123
      // Predicated region
      $region9: #{tpu_custom_call.1} parent=5 // pred_check
        _
      $region10: #{tpu_custom_call.1} parent=5 // pred_check_branch
        %126 = sbr.rel (%p123) target = $region12
      $region11: #{tpu_custom_call.1} parent=5 // pred_region
        %s127 = ssub.s32 %s17, 1
      $region12: #{tpu_custom_call.1} parent=5 // pred_fallthru
        _
      %p128 = scmp.lt.s32.totalorder %s17, 2
      // Predicated region
      $region13: #{tpu_custom_call.1} parent=5 // pred_check
        %p129 = pneg %p128
      $region14: #{tpu_custom_call.1} parent=5 // pred_check_branch
        %131 = sbr.rel (%p129) target = $region16
      $region15: #{tpu_custom_call.1} parent=5 // pred_region
        // Predicated region
        $region17: #{tpu_custom_call.1} parent=15 // pred_check
          %p132 = pneg %p51
        $region18: #{tpu_custom_call.1} parent=15 // pred_check_branch
          %134 = sbr.rel (%p132) target = $region20
        $region19: #{tpu_custom_call.1} parent=15 // pred_region
          %s135 = sand.u32 %s41, 1
          %s136 = scalar_lea.sflag [#allocation3], %s135
          %s137 = sand.u32 %s41, 1
          %s138 = smul.addr %s137, 2
          %s139 = scalar_lea.vmem [#allocation2], %s138
          %s140 = smul.u32 2, %s25
          %s142 = ssub.s32 32, 32
          %143 = vsyncadd %s136, %s142
          %s144 = smul.addr %s24, 2
          %s145 = sadd.s32 %s140, %s144
          %s146 = smul.addr %s145, 16
          %s147 = scalar_lea.hbm %s0, %s146
          %s149 = sshll.u32 %s139, 4
          %s150 = int_to_ptr.vmem [resolvable:$true] %s149
          %152 = dma.hbm_to_vmem [thread:$0]  %s147, 32, %s150, %s136
        $region20: #{tpu_custom_call.1} parent=15 // pred_fallthru
          _
        // Predicated region
        $region21: #{tpu_custom_call.1} parent=15 // pred_check
          %p153 = pneg %p79
        $region22: #{tpu_custom_call.1} parent=15 // pred_check_branch
          %155 = sbr.rel (%p153) target = $region24
        $region23: #{tpu_custom_call.1} parent=15 // pred_region
          %s156 = sand.u32 %s69, 1
          %s157 = scalar_lea.sflag [#allocation6], %s156
          %s158 = sand.u32 %s69, 1
          %s159 = smul.addr %s158, 8
          %s160 = scalar_lea.vmem [#allocation5], %s159
          %s161 = smul.u32 2, %s25
          %s163 = ssub.s32 128, 128
          %164 = vsyncadd %s157, %s163
          %s165 = smul.addr %s24, 2
          %s166 = sadd.s32 %s161, %s165
          %s167 = smul.addr %s166, 64
          %s168 = scalar_lea.hbm %s1, %s167
          %s170 = sshll.u32 %s160, 4
          %s171 = int_to_ptr.vmem [resolvable:$true] %s170
          %173 = dma.hbm_to_vmem [thread:$0]  %s168, 128, %s171, %s157
        $region24: #{tpu_custom_call.1} parent=15 // pred_fallthru
          _
      $region16: #{tpu_custom_call.1} parent=5 // pred_fallthru
        _
      %p174 = scmp.le.s32.totalorder 1, %s17
      %p175 = scmp.lt.s32.totalorder %s17, 3
      %p176 = pnand %p174, %p175
      %p177 = pneg %p176
      // Predicated region
      $region25: #{tpu_custom_call.1} parent=5 // pred_check
        _
      $region26: #{tpu_custom_call.1} parent=5 // pred_check_branch
        %179 = sbr.rel (%p176) target = $region28
      $region27: #{tpu_custom_call.1} parent=5 // pred_region
        %s180 = ssub.s32 %s17, 1
        %s181 = sand.u32 %s44, 1
        %s182 = scalar_lea.sflag [#allocation3], %s181
        %s183 = sand.u32 %s44, 1
        %s184 = smul.addr %s183, 2
        %s185 = scalar_lea.vmem [#allocation2], %s184
        // Predicated region
        $region29: #{tpu_custom_call.1} parent=27 // pred_check
          %p186 = pneg %p57
        $region30: #{tpu_custom_call.1} parent=27 // pred_check_branch
          %188 = sbr.rel (%p186) target = $region32
        $region31: #{tpu_custom_call.1} parent=27 // pred_region
          %189 = dma.done %s182, 32
        $region32: #{tpu_custom_call.1} parent=27 // pred_fallthru
          _
        %s190 = sand.u32 %s72, 1
        %s191 = scalar_lea.sflag [#allocation6], %s190
        %s192 = sand.u32 %s72, 1
        %s193 = smul.addr %s192, 8
        %s194 = scalar_lea.vmem [#allocation5], %s193
        // Predicated region
        $region33: #{tpu_custom_call.1} parent=27 // pred_check
          %p195 = pneg %p85
        $region34: #{tpu_custom_call.1} parent=27 // pred_check_branch
          %197 = sbr.rel (%p195) target = $region36
        $region35: #{tpu_custom_call.1} parent=27 // pred_region
          %198 = dma.done %s191, 128
        $region36: #{tpu_custom_call.1} parent=27 // pred_fallthru
          _
        %s199 = sand.u32 %s44, 1
        %s200 = scalar_lea.sflag [#allocation3], %s199
        %s201 = sand.u32 %s44, 1
        %s202 = smul.addr %s201, 2
        %s203 = scalar_lea.vmem [#allocation2], %s202
        %p204 = pneg %p57
        %p205 = pneg %p54
        %s206 = sand.u32 %s72, 1
        %s207 = scalar_lea.sflag [#allocation6], %s206
        %s208 = sand.u32 %s72, 1
        %s209 = smul.addr %s208, 8
        %s210 = scalar_lea.vmem [#allocation5], %s209
        %p211 = pneg %p85
        %p212 = pneg %p82
        %p213 = pneg %p113
        %p214 = pneg %p110
        %s215 = sand.u32 %s100, 1
        %s216 = scalar_lea.sflag [#allocation4], %s215
        %s217 = sand.u32 %s100, 1
        %s218 = smul.addr %s217, 8
        %s219 = scalar_lea.vmem [#allocation7], %s218
        %s220 = smul.u32 2, %s27
        %s221 = smul.u32 2, %s27
        %s222 = smul.u32 2, %s27
        %v223 = vld [vmem:[%s194] sm:$0xff]
        %v224 = vld [vmem:[%s185] sm:$0x3]
        %v225 = vlaneseq
        %v226 = vshrl.u32 %v225, 7
        %v227 = vlaneseq
        %v228 = vshrl.u32 %v227, 7
        %v229 = vsub.s32 0, %v228
        %v230 = vrot.slane %v224, %v229
        %v231 = vlaneseq
        %v232 = vshrl.u32 %v231, 7
        %v233 = vsub.s32 1, %v232
        %v234 = vrot.slane %v224, %v233
        %vm235 = vcmp.eq.s32.totalorder %v226, %v230
        %vm236 = vcmp.eq.s32.totalorder %v226, %v234
        %v237 = vsel %vm235, 1, 0
        %v238 = vsel %vm236, 1, 0
        %v239 = vcvt.s32.f32 %v237
        %v240 = vcvt.s32.f32 %v238
        %v241 = vand.u32 2147483647, %v223
        %v242 = vsub.f32 0.0, %v241
        %v243 = vmul.f32 %v242, 1.442695
        %v244 = vpow.pop %v243
        %v245 = vadd.f32 %v244, 1.0
        %v246 = vrcp.pop %v245
        %v247 = vmul.f32 1.0, %v246
        %vm248 = vcmp.ge.f32.partialorder %v223, 0.0
        %v249 = vmul.f32 %v244, %v247
        %v250 = vsel %vm248, %v247, %v249
        %v251 = vmax.f32 %v223, 0.0
        %v254 = vcombine.low %v239, %v240
        %v256 = vmul.f32 %v223, %v254
        %v257 = vsub.f32 %v251, %v256
        %v258 = vadd.f32 %v244, 1.0
        %v259 = vlog2.pop %v258
        %v260 = vmul.f32 %v259, 0.6931472
        %v261 = vmul.f32 -0.5, %v244
        %v262 = vadd.f32 %v261, 1.0
        %v263 = vmul.f32 %v262, %v244
        %v264 = vand.u32 2147483647, %v244
        %vm265 = vcmp.lt.f32.partialorder %v264, 0.0004427343
        %v266 = vsel %vm265, %v263, %v260
        %v267 = vadd.f32 %v257, %v266
        %v269 = vcombine.high %v250, %v250
        %v271 = vmul.f32 %v239, %v250
        %v272 = vmul.f32 %v240, %v269
        %v273 = vsub.f32 1.0, %v239
        %v274 = vsub.f32 1.0, %v240
        %v275 = vsub.f32 1.0, %v250
        %v277 = vcombine.high %v275, %v275
        %v279 = vmul.f32 %v273, %v275
        %v280 = vmul.f32 %v274, %v277
        %v281 = vadd.f32 %v271, %v279
        %v282 = vadd.f32 %v272, %v280
        %v283 = vsub.f32 1.0, %v281
        %v284 = vsub.f32 1.0, %v282
        %v285 = vmul.f32 %v283, %v283
        %v286 = vmul.f32 %v284, %v284
        %v289 = vcombine.low %v285, %v286
        %v291 = vmul.f32 %v267, %v289
        %v292 = vmul.f32 %v239, 0.25
        %v293 = vmul.f32 %v240, 0.25
        %v294 = vmul.f32 %v273, 0.75
        %v295 = vmul.f32 %v274, 0.75
        %v296 = vadd.f32 %v292, %v294
        %v297 = vadd.f32 %v293, %v295
        %v299 = vcombine.high %v291, %v291
        %v301 = vmul.f32 %v296, %v291
        %v302 = vmul.f32 %v297, %v299
        %v303 = vmul.f32 %v285, %v283
        %v304 = vmul.f32 %v286, %v284
        %v305 = vadd.f32 %v301, %v303
        %v306 = vadd.f32 %v302, %v304
        %v309 = vcombine.low %v305, %v306
        %311 = vst [vmem:[%s219] sm:$0xff] %v309
        %s312 = sand.u32 %s100, 1
        %s313 = scalar_lea.sflag [#allocation4], %s312
        %s314 = sand.u32 %s100, 1
        %s315 = smul.addr %s314, 8
        %s316 = scalar_lea.vmem [#allocation7], %s315
        // Predicated region
        $region37: #{tpu_custom_call.1} parent=27 // pred_check
          %p317 = pneg %p110
        $region38: #{tpu_custom_call.1} parent=27 // pred_check_branch
          %319 = sbr.rel (%p317) target = $region40
        $region39: #{tpu_custom_call.1} parent=27 // pred_region
          %s320 = smul.u32 2, %s27
          %s322 = ssub.s32 128, 128
          %323 = vsyncadd %s313, %s322
          %s324 = smul.addr %s26, 2
          %s325 = sadd.s32 %s320, %s324
          %s326 = smul.addr %s325, 64
          %s327 = scalar_lea.hbm %s2, %s326
          %s329 = sshll.u32 %s316, 4
          %s330 = int_to_ptr.vmem [resolvable:$true] %s329
          %332 = dma.vmem_to_hbm [thread:$0]  %s330, 128, %s327, %s313
        $region40: #{tpu_custom_call.1} parent=27 // pred_fallthru
          _
      $region28: #{tpu_custom_call.1} parent=5 // pred_fallthru
        _
      %p333 = scmp.le.s32.totalorder 2, %s17
      // Predicated region
      $region41: #{tpu_custom_call.1} parent=5 // pred_check
        %p334 = pneg %p333
      $region42: #{tpu_custom_call.1} parent=5 // pred_check_branch
        %336 = sbr.rel (%p334) target = $region44
      $region43: #{tpu_custom_call.1} parent=5 // pred_region
        %s337 = ssub.s32 %s17, 2
        // Predicated region
        $region45: #{tpu_custom_call.1} parent=43 // pred_check
          %p338 = pneg %p116
        $region46: #{tpu_custom_call.1} parent=43 // pred_check_branch
          %340 = sbr.rel (%p338) target = $region48
        $region47: #{tpu_custom_call.1} parent=43 // pred_region
          %s341 = sand.u32 %s101, 1
          %s342 = scalar_lea.sflag [#allocation4], %s341
          %s343 = sand.u32 %s101, 1
          %s344 = smul.addr %s343, 8
          %s345 = scalar_lea.vmem [#allocation7], %s344
          %346 = dma.done %s342, 128
        $region48: #{tpu_custom_call.1} parent=43 // pred_fallthru
          _
      $region44: #{tpu_custom_call.1} parent=5 // pred_fallthru
        _
    $region6: #{tpu_custom_call.1} parent=1 // loop_footer
      %s21 = sadd.s32 1, %s17
    $region7: #{tpu_custom_call.1} parent=1 // loop_footer_branch
      %16 = sbr.rel target = $region3
    $region8: #{tpu_custom_call.1} parent=1 // loop_exit
      _
    %347 = vsyncpa [#allocation3], 1
    %s348 = scalar_lea.sflag [#allocation3], 1
    %349 = vsyncpa %s348, 1
    %350 = vsyncpa [#allocation6], 1
    %s351 = scalar_lea.sflag [#allocation6], 1
    %352 = vsyncpa %s351, 1
    %353 = vsyncpa [#allocation4], 1
    %s354 = scalar_lea.sflag [#allocation4], 1
    %355 = vsyncpa %s354, 1

</llo_original>
